<compile_context>
chip_gen: v7x
topology: tpu7x:2x2x1
jax: 0.10.0
libtpu: 0.0.40
codegen_flags: <defaults>
</compile_context>

<pallas_src>
import math
import functools

import jax
import jax.numpy as jnp
import numpy as np
from jax import lax
from jax.experimental import pallas as pl
from jax.experimental.pallas import tpu as pltpu

_MB = 1024 * 1024


def _round_up(x, m):
    return ((x + m - 1) // m) * m


def _seq_tiles(seq_len):
    """Pick (tq, tkv, padded_seq).  Never falls back to one giant block."""
    if seq_len >= 256:
        tq = 256
        s_pad = _round_up(seq_len, 256)
        tkv = 512 if s_pad % 512 == 0 else 256   # wider N when it divides
    else:
        t = _round_up(seq_len, 8)                # sublane-aligned small case
        tq = tkv = t
        s_pad = t
    return tq, tkv, s_pad


def _vmem_limit(estimate_bytes):
    """Per-call scoped VMEM limit: 2x estimated footprint, clamped to [8, 64] MiB."""
    return int(min(64 * _MB, max(8 * _MB, 2 * estimate_bytes)))


# --------------------------------------------------------------------------- #
# Fused QKV projection: qkv = x @ W_qkv + b_qkv ; q pre-scaled by 1/sqrt(hd)
# --------------------------------------------------------------------------- #
def _qkv_proj_kernel(x_ref, w_ref, b_ref, q_ref, k_ref, v_ref, *,
                     hidden, scale, matmul_dtype):
    x = x_ref[...].astype(matmul_dtype)                       # (tm, H)
    qkv = jnp.dot(x, w_ref[...],
                  preferred_element_type=jnp.float32) + b_ref[...]   # (tm, 3H) f32
    # Fold 1/sqrt(head_dim) into q once (S*H multiplies instead of S*S per head).
    q_ref[...] = (qkv[:, :hidden] * scale).astype(q_ref.dtype)
    k_ref[...] = qkv[:, hidden:2 * hidden].astype(k_ref.dtype)
    v_ref[...] = qkv[:, 2 * hidden:].astype(v_ref.dtype)


def _project_qkv(x_pad, wqkv, bqkv, *, row_tile, scale, matmul_dtype, store_dtype):
    B, s_pad, H = x_pad.shape
    tm = row_tile
    kernel = functools.partial(_qkv_proj_kernel, hidden=H, scale=scale,
                               matmul_dtype=matmul_dtype)

    row_spec = pl.BlockSpec((None, tm, H), lambda b, i: (b, i, 0))
    out_sds = jax.ShapeDtypeStruct((B, s_pad, H), store_dtype)

    w_bytes = wqkv.size * jnp.dtype(wqkv.dtype).itemsize
    est = (2 * tm * H * jnp.dtype(x_pad.dtype).itemsize              # x tile x2
           + 2 * 3 * tm * H * jnp.dtype(store_dtype).itemsize        # q/k/v tiles x2
           + 2 * w_bytes                                             # fused weight
           + tm * 3 * H * 4)                                         # f32 intermediate
    return pl.pallas_call(
        kernel,
        out_shape=(out_sds, out_sds, out_sds),
        grid_spec=pltpu.PrefetchScalarGridSpec(
            num_scalar_prefetch=0,
            grid=(B, s_pad // tm),
            in_specs=[row_spec,
                      pl.BlockSpec((H, 3 * H), lambda b, i: (0, 0)),
                      pl.BlockSpec((1, 3 * H), lambda b, i: (0, 0))],
            out_specs=[row_spec, row_spec, row_spec],
        ),
        compiler_params=pltpu.CompilerParams(
            dimension_semantics=("parallel", "parallel"),
            vmem_limit_bytes=_vmem_limit(est)),
    )(x_pad, wqkv, bqkv)


# --------------------------------------------------------------------------- #
# Flash attention (online softmax) fused with the output projection.
#   grid = (batch, q_block, kv_block);  kv axis is the "arbitrary" reduction.
#   q/k/v blocks are lane-dense (t, H) rows; heads are split in-VMEM.
#   Finalize: out = sum_h (acc_h / l_h) @ Wo[h]  + b_o   (lane-dense store).
# --------------------------------------------------------------------------- #
def _flash_out_kernel(q_ref, k_ref, v_ref, wo_ref, bo_ref, o_ref,
                      m_sc, l_sc, acc_sc, *,
                      num_heads, head_dim, hidden, tkv, seq_valid, need_mask,
                      matmul_dtype):
    kv = pl.program_id(2)

    @pl.when(kv == 0)
    def _():
        m_sc[...] = jnp.full(m_sc.shape, -jnp.inf, dtype=jnp.float32)
        l_sc[...] = jnp.zeros(l_sc.shape, dtype=jnp.float32)
        acc_sc[...] = jnp.zeros(acc_sc.shape, dtype=jnp.float32)

    q = q_ref[...]                                    # (tq, H), already scaled
    k = k_ref[...]                                    # (tkv, H)
    v = v_ref[...]                                    # (tkv, H)
    tq = q_ref.shape[0]

    if need_mask:
        col = kv * tkv + lax.broadcasted_iota(jnp.int32, (tq, tkv), 1)
        kv_valid = col < seq_valid

    for h in range(num_heads):                        # static unroll, small nh
        lo = h * head_dim
        hi = lo + head_dim
        q_h = q[:, lo:hi]                             # (tq, hd)
        k_h = k[:, lo:hi]                             # (tkv, hd)
        v_h = v[:, lo:hi]                             # (tkv, hd)

        # q @ k^T without an explicit transpose: contract dim 1 of both.
        s = lax.dot_general(q_h, k_h, (((1,), (1,)), ((), ())),
                            preferred_element_type=jnp.float32)   # (tq, tkv)
        if need_mask:
            s = jnp.where(kv_valid, s, -jnp.inf)

        m_prev = m_sc[h]                              # (tq, 1)
        m_new = jnp.maximum(m_prev, jnp.max(s, axis=-1, keepdims=True))
        alpha = jnp.exp(m_prev - m_new)
        p = jnp.exp(s - m_new)
        l_sc[h] = alpha * l_sc[h] + jnp.sum(p, axis=-1, keepdims=True)
        acc_sc[h] = alpha * acc_sc[h] + jnp.dot(
            p.astype(matmul_dtype), v_h, preferred_element_type=jnp.float32)
        m_sc[h] = m_new

    @pl.when(kv == pl.num_programs(2) - 1)
    def _():
        # Fused output projection: out = sum_h (acc_h / l_h) @ Wo[h] + b_o.
        # Exact reciprocal kept for tight agreement with the f32 reference;
        # switch to approx=True at scale (EUP slot, nearly free).
        out = jnp.zeros((tq, hidden), dtype=jnp.float32)
        for h in range(num_heads):
            inv_l = pl.reciprocal(l_sc[h], approx=False)
            acc_h = (acc_sc[h] * inv_l).astype(matmul_dtype)        # (tq, hd)
            out = out + jnp.dot(acc_h, wo_ref[h],
                                preferred_element_type=jnp.float32)
        o_ref[...] = (out + bo_ref[...]).astype(o_ref.dtype)


def _flash_attention_out(q, k, v, wo3, bo, *, tq, tkv, seq_valid, out_dtype,
                         matmul_dtype):
    B, s_pad, H = q.shape
    nh, hd, _ = wo3.shape
    need_mask = (s_pad != seq_valid)

    kernel = functools.partial(
        _flash_out_kernel, num_heads=nh, head_dim=hd, hidden=H, tkv=tkv,
        seq_valid=seq_valid, need_mask=need_mask, matmul_dtype=matmul_dtype)

    q_spec = pl.BlockSpec((None, tq, H), lambda b, qi, ki: (b, qi, 0))
    kv_spec = pl.BlockSpec((None, tkv, H), lambda b, qi, ki: (b, ki, 0))
    wo_spec = pl.BlockSpec((nh, hd, H), lambda b, qi, ki: (0, 0, 0))
    bo_spec = pl.BlockSpec((1, H), lambda b, qi, ki: (0, 0))
    o_spec = pl.BlockSpec((None, tq, H), lambda b, qi, ki: (b, qi, 0))

    itm = jnp.dtype(q.dtype).itemsize
    witm = jnp.dtype(wo3.dtype).itemsize
    oitm = jnp.dtype(out_dtype).itemsize
    est = (2 * tq * H * itm                     # q tile x2 buffers
           + 2 * 2 * tkv * H * itm              # k, v tiles x2 buffers
           + 2 * (nh * hd * H + H) * witm       # resident Wo / b_o
           + 2 * tq * H * oitm                  # output tile x2 buffers
           + nh * tq * (hd + 2) * 4             # scratch m, l, acc (f32)
           + 4 * tq * tkv * 4)                  # score/p live intermediates
    cost = pl.CostEstimate(
        flops=4 * B * nh * s_pad * s_pad * hd + 2 * B * s_pad * H * H,
        transcendentals=B * nh * s_pad * s_pad,
        bytes_accessed=(B * s_pad * H * itm                       # q read once
                        + 2 * B * s_pad * H * itm * (s_pad // tq)  # k/v re-reads
                        + B * s_pad * H * oitm),
    )

    return pl.pallas_call(
        kernel,
        out_shape=jax.ShapeDtypeStruct((B, s_pad, H), out_dtype),
        grid_spec=pltpu.PrefetchScalarGridSpec(
            num_scalar_prefetch=0,
            grid=(B, s_pad // tq, s_pad // tkv),
            in_specs=[q_spec, kv_spec, kv_spec, wo_spec, bo_spec],
            out_specs=o_spec,
            scratch_shapes=[
                pltpu.VMEM((nh, tq, 1), jnp.float32),    # running max per head
                pltpu.VMEM((nh, tq, 1), jnp.float32),    # running denom per head
                pltpu.VMEM((nh, tq, hd), jnp.float32),   # output accumulator
            ],
        ),
        compiler_params=pltpu.CompilerParams(
            dimension_semantics=("parallel", "parallel", "arbitrary"),
            vmem_limit_bytes=_vmem_limit(est)),
        cost_estimate=cost,
    )(q, k, v, wo3, bo)


# --------------------------------------------------------------------------- #
# Full forward
# --------------------------------------------------------------------------- #
def longformer_self_attention(x, params, num_heads, *, matmul_dtype=jnp.float32):
    """x: (B, S, H). params: pre-transposed (in,out) weights and (1,H) biases.

    matmul_dtype=jnp.bfloat16 runs all MXU matmuls in bf16 (f32 accumulation,
    f32 softmax state) -- the production configuration on v5e/v6e/v7x.
    """
    B, S, H = x.shape
    hd = H // num_heads
    scale = 1.0 / math.sqrt(hd)
    tq, tkv, s_pad = _seq_tiles(S)

    # Parameter prep (in production, do once at parameter-load time):
    # fused QKV weight/bias, per-head-reshaped output weight, matmul-dtype cast.
    wqkv = jnp.concatenate([params["wq"], params["wk"], params["wv"]],
                           axis=1).astype(matmul_dtype)                # (H, 3H)
    bqkv = jnp.concatenate([params["bq"], params["bk"], params["bv"]],
                           axis=1).astype(jnp.float32)                 # (1, 3H)
    wo3 = params["wo"].reshape(num_heads, hd, H).astype(matmul_dtype)  # (nh, hd, H)
    bo = params["bo"].astype(jnp.float32)                              # (1, H)

    x_pad = x if s_pad == S else jnp.pad(x, ((0, 0), (0, s_pad - S), (0, 0)))

    q, k, v = _project_qkv(x_pad, wqkv, bqkv, row_tile=tkv, scale=scale,
                           matmul_dtype=matmul_dtype, store_dtype=matmul_dtype)

    out = _flash_attention_out(q, k, v, wo3, bo, tq=tq, tkv=tkv, seq_valid=S,
                               out_dtype=x.dtype, matmul_dtype=matmul_dtype)
    return out if s_pad == S else out[:, :S, :]


# --------------------------------------------------------------------------- #
# Init / reference / test
# --------------------------------------------------------------------------- #
def _init_linear(key, in_features, out_features):
    """PyTorch-style nn.Linear init; weight returned pre-transposed to (in, out)."""
    kw, kb = jax.random.split(key)
    bound = 1.0 / math.sqrt(in_features)
    w = jax.random.uniform(kw, (out_features, in_features),
                           minval=-bound, maxval=bound, dtype=jnp.float32)
    b = jax.random.uniform(kb, (out_features,),
                           minval=-bound, maxval=bound, dtype=jnp.float32)
    return w.T, b.reshape(1, out_features)


def _reference(x, params, num_heads):
    """Pure-JAX reference mirroring the PyTorch forward (eval mode, no mask)."""
    B, S, H = x.shape
    hd = H // num_heads
    q = x @ params["wq"] + params["bq"]
    k = x @ params["wk"] + params["bk"]
    v = x @ params["wv"] + params["bv"]
    q = q.reshape(B, S, num_heads, hd).transpose(0, 2, 1, 3)
    k = k.reshape(B, S, num_heads, hd).transpose(0, 2, 1, 3)
    v = v.reshape(B, S, num_heads, hd).transpose(0, 2, 1, 3)
    s = jnp.einsum("bhqd,bhkd->bhqk", q, k) / math.sqrt(hd)
    p = jax.nn.softmax(s, axis=-1)
    o = jnp.einsum("bhqk,bhkd->bhqd", p, v)
    o = o.transpose(0, 2, 1, 3).reshape(B, S, H)
    return o @ params["wo"] + params["bo"]


if __name__ == "__main__":
    batch, seq_len, hidden_size, num_heads = 2, 8, 32, 4

    key = jax.random.PRNGKey(0)
    kx, kx2, kq, kk, kv_, ko = jax.random.split(key, 6)

    x = jax.random.normal(kx, (batch, seq_len, hidden_size), dtype=jnp.float32)

    wq, bq = _init_linear(kq, hidden_size, hidden_size)
    wk, bk = _init_linear(kk, hidden_size, hidden_size)
    wv, bv = _init_linear(kv_, hidden_size, hidden_size)
    wo, bo = _init_linear(ko, hidden_size, hidden_size)
    params = dict(wq=wq, bq=bq, wk=wk, bk=bk, wv=wv, bv=bv, wo=wo, bo=bo)

    # 1) f32 path: exact agreement with the f32 reference.
    out = jax.block_until_ready(longformer_self_attention(x, params, num_heads))
    ref = _reference(x, params, num_heads)
    np.testing.assert_allclose(np.asarray(out), np.asarray(ref),
                               rtol=1e-4, atol=1e-4)

    # 2) Unaligned sequence length (exercises seq padding + KV mask path).
    x2 = jax.random.normal(kx2, (batch, 10, hidden_size), dtype=jnp.float32)
    out2 = jax.block_until_ready(longformer_self_attention(x2, params, num_heads))
    ref2 = _reference(x2, params, num_heads)
    np.testing.assert_allclose(np.asarray(out2), np.asarray(ref2),
                               rtol=1e-4, atol=1e-4)

    # 3) bf16 MXU path (production config); f32 accumulation, loose tolerance.
    out_bf = jax.block_until_ready(
        longformer_self_attention(x, params, num_heads, matmul_dtype=jnp.bfloat16))
    np.testing.assert_allclose(np.asarray(out_bf), np.asarray(ref),
                               rtol=1e-1, atol=1e-1)

    print("KERNEL_OK")
</pallas_src>

<mosaic_0001>
module attributes {stable_mosaic.version = 11 : i64} {
  func.func @_qkv_proj_kernel(%arg0: i32, %arg1: i32, %arg2: memref<1x8x32xf32, #tpu.memory_space<vmem>>, %arg3: memref<32x96xf32, #tpu.memory_space<vmem>>, %arg4: memref<1x96xf32, #tpu.memory_space<vmem>>, %arg5: memref<1x8x32xf32, #tpu.memory_space<vmem>>, %arg6: memref<1x8x32xf32, #tpu.memory_space<vmem>>, %arg7: memref<1x8x32xf32, #tpu.memory_space<vmem>>) attributes {dimension_semantics = [#tpu.dimension_semantics<parallel>, #tpu.dimension_semantics<parallel>], iteration_bounds = array<i64: 2, 1>, scalar_prefetch = 0 : i64, scratch_operands = 0 : i64, tpu.core_type = #tpu.core_type<tc>, window_params = [{transform_indices = @transform_0, window_bounds = array<i64: 1, 8, 32>}, {pipeline_mode = #tpu.pipeline_mode<synchronous>, transform_indices = @transform_1, window_bounds = array<i64: 32, 96>}, {pipeline_mode = #tpu.pipeline_mode<synchronous>, transform_indices = @transform_2, window_bounds = array<i64: 1, 96>}, {transform_indices = @transform_3, window_bounds = array<i64: 1, 8, 32>}, {transform_indices = @transform_4, window_bounds = array<i64: 1, 8, 32>}, {transform_indices = @transform_5, window_bounds = array<i64: 1, 8, 32>}]} {
    %c0 = arith.constant 0 : index
    %c0_0 = arith.constant 0 : index
    %c0_1 = arith.constant 0 : index
    %0 = vector.load %arg2[%c0, %c0_0, %c0_1] : memref<1x8x32xf32, #tpu.memory_space<vmem>>, vector<1x8x32xf32>
    %1 = vector.shape_cast %0 : vector<1x8x32xf32> to vector<8x32xf32>
    %c0_2 = arith.constant 0 : index
    %c0_3 = arith.constant 0 : index
    %2 = vector.load %arg3[%c0_2, %c0_3] : memref<32x96xf32, #tpu.memory_space<vmem>>, vector<32x96xf32>
    %cst = arith.constant dense<0.000000e+00> : vector<8x96xf32>
    %3 = tpu.matmul %1, %2, %cst {dimension_numbers = #tpu.dot_dimension_numbers<[1], [0], [0], [1], [0, 0, 1, 1], [], []>} : vector<8x32xf32>, vector<32x96xf32>, vector<8x96xf32> -> vector<8x96xf32>
    %c0_4 = arith.constant 0 : index
    %c0_5 = arith.constant 0 : index
    %4 = vector.load %arg4[%c0_4, %c0_5] : memref<1x96xf32, #tpu.memory_space<vmem>>, vector<1x96xf32>
    %5 = vector.broadcast %4 : vector<1x96xf32> to vector<8x96xf32>
    %6 = arith.addf %3, %5 : vector<8x96xf32>
    %7 = vector.extract_strided_slice %6 {offsets = [0, 0], sizes = [8, 32], strides = [1, 1]} : vector<8x96xf32> to vector<8x32xf32>
    %cst_6 = arith.constant 0.353553385 : f32
    %8 = vector.broadcast %cst_6 : f32 to vector<8x32xf32>
    %9 = arith.mulf %7, %8 : vector<8x32xf32>
    %c0_7 = arith.constant 0 : index
    %c0_8 = arith.constant 0 : index
    %c0_9 = arith.constant 0 : index
    %10 = vector.load %arg5[%c0_7, %c0_8, %c0_9] : memref<1x8x32xf32, #tpu.memory_space<vmem>>, vector<1x8x32xf32>
    %11 = vector.shape_cast %10 : vector<1x8x32xf32> to vector<8x32xf32>
    %12 = vector.shape_cast %9 : vector<8x32xf32> to vector<1x8x32xf32>
    tpu.vector_store %arg5[%c0_7, %c0_8, %c0_9], %12 {strides = array<i32>} : memref<1x8x32xf32, #tpu.memory_space<vmem>>, vector<1x8x32xf32>,
    %13 = vector.extract_strided_slice %6 {offsets = [0, 32], sizes = [8, 32], strides = [1, 1]} : vector<8x96xf32> to vector<8x32xf32>
    %c0_10 = arith.constant 0 : index
    %c0_11 = arith.constant 0 : index
    %c0_12 = arith.constant 0 : index
    %14 = vector.load %arg6[%c0_10, %c0_11, %c0_12] : memref<1x8x32xf32, #tpu.memory_space<vmem>>, vector<1x8x32xf32>
    %15 = vector.shape_cast %14 : vector<1x8x32xf32> to vector<8x32xf32>
    %16 = vector.shape_cast %13 : vector<8x32xf32> to vector<1x8x32xf32>
    tpu.vector_store %arg6[%c0_10, %c0_11, %c0_12], %16 {strides = array<i32>} : memref<1x8x32xf32, #tpu.memory_space<vmem>>, vector<1x8x32xf32>,
    %17 = vector.extract_strided_slice %6 {offsets = [0, 64], sizes = [8, 32], strides = [1, 1]} : vector<8x96xf32> to vector<8x32xf32>
    %c0_13 = arith.constant 0 : index
    %c0_14 = arith.constant 0 : index
    %c0_15 = arith.constant 0 : index
    %18 = vector.load %arg7[%c0_13, %c0_14, %c0_15] : memref<1x8x32xf32, #tpu.memory_space<vmem>>, vector<1x8x32xf32>
    %19 = vector.shape_cast %18 : vector<1x8x32xf32> to vector<8x32xf32>
    %20 = vector.shape_cast %17 : vector<8x32xf32> to vector<1x8x32xf32>
    tpu.vector_store %arg7[%c0_13, %c0_14, %c0_15], %20 {strides = array<i32>} : memref<1x8x32xf32, #tpu.memory_space<vmem>>, vector<1x8x32xf32>,
    return
  }
  func.func @transform_0(%arg0: i32, %arg1: i32) -> (i32, i32, i32) {
    %c0_i32 = arith.constant 0 : i32
    %c0_i32_0 = arith.constant 0 : i32
    return %arg0, %arg1, %c0_i32 : i32, i32, i32
  }
  func.func @transform_1(%arg0: i32, %arg1: i32) -> (i32, i32) {
    %c0_i32 = arith.constant 0 : i32
    %c0_i32_0 = arith.constant 0 : i32
    %c0_i32_1 = arith.constant 0 : i32
    return %c0_i32, %c0_i32_0 : i32, i32
  }
  func.func @transform_2(%arg0: i32, %arg1: i32) -> (i32, i32) {
    %c0_i32 = arith.constant 0 : i32
    %c0_i32_0 = arith.constant 0 : i32
    %c0_i32_1 = arith.constant 0 : i32
    return %c0_i32, %c0_i32_0 : i32, i32
  }
  func.func @transform_3(%arg0: i32, %arg1: i32) -> (i32, i32, i32) {
    %c0_i32 = arith.constant 0 : i32
    %c0_i32_0 = arith.constant 0 : i32
    return %arg0, %arg1, %c0_i32 : i32, i32, i32
  }
  func.func @transform_4(%arg0: i32, %arg1: i32) -> (i32, i32, i32) {
    %c0_i32 = arith.constant 0 : i32
    %c0_i32_0 = arith.constant 0 : i32
    return %arg0, %arg1, %c0_i32 : i32, i32, i32
  }
  func.func @transform_5(%arg0: i32, %arg1: i32) -> (i32, i32, i32) {
    %c0_i32 = arith.constant 0 : i32
    %c0_i32_0 = arith.constant 0 : i32
    return %arg0, %arg1, %c0_i32 : i32, i32, i32
  }
}

</mosaic_0001>

<llo_original>
// kernel: tpu_custom_call.1
$region0: #{tpu_custom_call.1}
  #allocation0 [shape = 'u32[]', space=smem, size = 0x4, offset = 0x4, fixed_abs, tag = 'smem constant byte address 0x4 - core index']
  #allocation1 [shape = 'u32[144,128]{1,0:T(1,128)}', space=vmem, size = 0x12000, scoped, tag = 'internal scratch']
  %s0 = inlined_call_operand.hbm [shape: f32[2,8,32], index: 0, kind: input, shape index: {}]
  %s1 = inlined_call_operand.hbm [shape: f32[32,96], index: 1, kind: input, shape index: {}]
  %s2 = inlined_call_operand.vmem [shape: f32[1,96], index: 2, kind: input, shape index: {}]
  %s3 = inlined_call_operand.hbm [shape: f32[2,8,32], index: 3, kind: output, shape index: {0}]
  %s4 = inlined_call_operand.hbm [shape: f32[2,8,32], index: 4, kind: output, shape index: {1}]
  %s5 = inlined_call_operand.hbm [shape: f32[2,8,32], index: 5, kind: output, shape index: {2}]
  %6 = xla_tuple %s3, %s4, %s5
  %s7 = sld [smem:[#allocation0]]
  $region69: #{tpu_custom_call.1} parent=0
    _
  %s9 = ssub.s32 1, %s7
  %s10 = scalar_select 0, %s9, %s7
  $region1: #{tpu_custom_call.1} parent=0
    #allocation2 [shape = 'u8[8192]{0}', space=vmem, size = 0x2000, scoped, tag = 'input window, operand 0']
    #allocation3 [shape = 's32[2]{0}', space=sflag, size = 0x8, scoped, tag = 'scoped memory for tpu_custom_call.1']
    #allocation4 [shape = 's32[2]{0}', space=sflag, size = 0x8, scoped, tag = 'scoped memory for tpu_custom_call.1']
    #allocation5 [shape = 'u8[16384]{0}', space=vmem, size = 0x4000, scoped, tag = 'input window, operand 1, single buffered']
    #allocation6 [shape = 's32[1]{0}', space=sflag, size = 0x4, scoped, tag = 'scoped memory for tpu_custom_call.1']
    #allocation7 [shape = 'u8[8192]{0}', space=vmem, size = 0x2000, scoped, tag = 'output window, operand 0']
    #allocation8 [shape = 'u8[8192]{0}', space=vmem, size = 0x2000, scoped, tag = 'output window, operand 1']
    #allocation9 [shape = 's32[2]{0}', space=sflag, size = 0x8, scoped, tag = 'scoped memory for tpu_custom_call.1']
    #allocation10 [shape = 'u8[8192]{0}', space=vmem, size = 0x2000, scoped, tag = 'output window, operand 2']
    %11 = vsyncpa [#allocation3], 0
    %s12 = scalar_lea.sflag [#allocation3], 1
    %13 = vsyncpa %s12, 0
    %14 = vsyncpa [#allocation6], 0
    %15 = vsyncpa [#allocation4], 0
    %s16 = scalar_lea.sflag [#allocation4], 1
    %17 = vsyncpa %s16, 0
    %18 = vsyncpa [#allocation9], 0
    %s19 = scalar_lea.sflag [#allocation9], 1
    %20 = vsyncpa %s19, 0
    loop: start=0, step=1, limit=4
    $region2: #{tpu_custom_call.1} parent=1 // loop_pre_header
      _
    $region3: #{tpu_custom_call.1} parent=1 // loop_header
      %s22 = sphi 0, %s26
      %p23 = scmp.ge.s32.totalorder %s22, 4
      %s29 = sphi 0, %s41
      %s30 = sphi 0, %s37
      %s31 = sphi 0, %s29
      %s32 = sphi 0, %s30
      %s33 = sphi 0, %s31
      %s34 = sphi 0, %s32
      %s46 = sphi 0, %s48
      %s49 = sphi 0, %s46
      %s50 = sphi 0, %s49
      %s66 = sphi 0, %s50
      %s70 = sphi 0, %s70
      %s72 = sphi 0, %s70
      %s73 = sphi 0, %s72
      %s87 = sphi 0, %s73
      %s91 = sphi 0, %s91
      %s93 = sphi 0, %s91
      %s94 = sphi 0, %s93
      %s108 = sphi 0, %s94
      %s116 = sphi 0, %s118
      %s119 = sphi 0, %s116
      %s120 = sphi 0, %s119
      %s136 = sphi 0, %s120
      %s144 = sphi 0, %s146
      %s147 = sphi 0, %s144
      %s148 = sphi 0, %s147
      %s164 = sphi 0, %s148
      %s172 = sphi 0, %s174
      %s175 = sphi 0, %s172
      %s176 = sphi 0, %s175
      %s192 = sphi 0, %s176
    $region4: #{tpu_custom_call.1} parent=1 // loop_header_branch
      %25 = sbr.rel (%p23) target = $region8
    $region5: #{tpu_custom_call.1} parent=1 // loop_body
      %s27 = ssub.s32 %s22, 1
      %s28 = ssub.s32 %s22, 2
      %s35 = sadd.s32 1, %s30
      %p36 = scmp.ge.s32.totalorder %s35, 1
      %s37 = scalar_select %p36, 0, %s35
      %s38 = sadd.s32 1, %s29
      %s39 = scalar_select %p36, %s38, %s29
      %p40 = scmp.ge.s32.totalorder %s39, 2
      %s41 = scalar_select %p40, 0, %s39
      %s42 = ssub.s32 %s29, %s41
      %s43 = ssub.s32 %s30, %s37
      %s44 = sor.u32 %s42, %s43
      %p45 = scmp.eq.s32.totalorder %s44, 0
      %s47 = sadd.s32 %s46, 1
      %s48 = scalar_select %p45, %s46, %s47
      %p51 = pneg %p45
      %p52 = scmp.eq.s32.totalorder %s22, 1
      %p53 = por %p51, %p52
      %p54 = scmp.ne.s32.totalorder %s46, %s49
      %p55 = scmp.eq.s32.totalorder %s22, 0
      %p56 = por %p54, %p55
      %p57 = scmp.ne.s32.totalorder %s46, %s49
      %p58 = scmp.eq.s32.totalorder %s27, 1
      %p59 = por %p57, %p58
      %p60 = scmp.ne.s32.totalorder %s49, %s50
      %p61 = scmp.eq.s32.totalorder %s27, 0
      %p62 = por %p60, %p61
      %p63 = scmp.ne.s32.totalorder %s49, %s50
      %p64 = scmp.eq.s32.totalorder %s28, 1
      %p65 = por %p63, %p64
      %p67 = scmp.ne.s32.totalorder %s50, %s66
      %p68 = scmp.eq.s32.totalorder %s28, 0
      %p69 = por %p67, %p68
      %s71 = sadd.s32 %s70, 1
      %p74 = scmp.eq.s32.totalorder %s22, 1
      %p75 = scmp.ne.s32.totalorder %s70, %s72
      %p76 = scmp.eq.s32.totalorder %s22, 0
      %p77 = por %p75, %p76
      %p78 = scmp.ne.s32.totalorder %s70, %s72
      %p79 = scmp.eq.s32.totalorder %s27, 1
      %p80 = por %p78, %p79
      %p81 = scmp.ne.s32.totalorder %s72, %s73
      %p82 = scmp.eq.s32.totalorder %s27, 0
      %p83 = por %p81, %p82
      %p84 = scmp.ne.s32.totalorder %s72, %s73
      %p85 = scmp.eq.s32.totalorder %s28, 1
      %p86 = por %p84, %p85
      %p88 = scmp.ne.s32.totalorder %s73, %s87
      %p89 = scmp.eq.s32.totalorder %s28, 0
      %p90 = por %p88, %p89
      %s92 = sadd.s32 %s91, 1
      %p95 = scmp.eq.s32.totalorder %s22, 1
      %p96 = scmp.ne.s32.totalorder %s91, %s93
      %p97 = scmp.eq.s32.totalorder %s22, 0
      %p98 = por %p96, %p97
      %p99 = scmp.ne.s32.totalorder %s91, %s93
      %p100 = scmp.eq.s32.totalorder %s27, 1
      %p101 = por %p99, %p100
      %p102 = scmp.ne.s32.totalorder %s93, %s94
      %p103 = scmp.eq.s32.totalorder %s27, 0
      %p104 = por %p102, %p103
      %p105 = scmp.ne.s32.totalorder %s93, %s94
      %p106 = scmp.eq.s32.totalorder %s28, 1
      %p107 = por %p105, %p106
      %p109 = scmp.ne.s32.totalorder %s94, %s108
      %p110 = scmp.eq.s32.totalorder %s28, 0
      %p111 = por %p109, %p110
      %s112 = ssub.s32 %s29, %s41
      %s113 = ssub.s32 %s30, %s37
      %s114 = sor.u32 %s112, %s113
      %p115 = scmp.eq.s32.totalorder %s114, 0
      %s117 = sadd.s32 %s116, 1
      %s118 = scalar_select %p115, %s116, %s117
      %p121 = pneg %p115
      %p122 = scmp.eq.s32.totalorder %s22, 1
      %p123 = por %p121, %p122
      %p124 = scmp.ne.s32.totalorder %s116, %s119
      %p125 = scmp.eq.s32.totalorder %s22, 0
      %p126 = por %p124, %p125
      %p127 = scmp.ne.s32.totalorder %s116, %s119
      %p128 = scmp.eq.s32.totalorder %s27, 1
      %p129 = por %p127, %p128
      %p130 = scmp.ne.s32.totalorder %s119, %s120
      %p131 = scmp.eq.s32.totalorder %s27, 0
      %p132 = por %p130, %p131
      %p133 = scmp.ne.s32.totalorder %s119, %s120
      %p134 = scmp.eq.s32.totalorder %s28, 1
      %p135 = por %p133, %p134
      %p137 = scmp.ne.s32.totalorder %s120, %s136
      %p138 = scmp.eq.s32.totalorder %s28, 0
      %p139 = por %p137, %p138
      %s140 = ssub.s32 %s29, %s41
      %s141 = ssub.s32 %s30, %s37
      %s142 = sor.u32 %s140, %s141
      %p143 = scmp.eq.s32.totalorder %s142, 0
      %s145 = sadd.s32 %s144, 1
      %s146 = scalar_select %p143, %s144, %s145
      %p149 = pneg %p143
      %p150 = scmp.eq.s32.totalorder %s22, 1
      %p151 = por %p149, %p150
      %p152 = scmp.ne.s32.totalorder %s144, %s147
      %p153 = scmp.eq.s32.totalorder %s22, 0
      %p154 = por %p152, %p153
      %p155 = scmp.ne.s32.totalorder %s144, %s147
      %p156 = scmp.eq.s32.totalorder %s27, 1
      %p157 = por %p155, %p156
      %p158 = scmp.ne.s32.totalorder %s147, %s148
      %p159 = scmp.eq.s32.totalorder %s27, 0
      %p160 = por %p158, %p159
      %p161 = scmp.ne.s32.totalorder %s147, %s148
      %p162 = scmp.eq.s32.totalorder %s28, 1
      %p163 = por %p161, %p162
      %p165 = scmp.ne.s32.totalorder %s148, %s164
      %p166 = scmp.eq.s32.totalorder %s28, 0
      %p167 = por %p165, %p166
      %s168 = ssub.s32 %s29, %s41
      %s169 = ssub.s32 %s30, %s37
      %s170 = sor.u32 %s168, %s169
      %p171 = scmp.eq.s32.totalorder %s170, 0
      %s173 = sadd.s32 %s172, 1
      %s174 = scalar_select %p171, %s172, %s173
      %p177 = pneg %p171
      %p178 = scmp.eq.s32.totalorder %s22, 1
      %p179 = por %p177, %p178
      %p180 = scmp.ne.s32.totalorder %s172, %s175
      %p181 = scmp.eq.s32.totalorder %s22, 0
      %p182 = por %p180, %p181
      %p183 = scmp.ne.s32.totalorder %s172, %s175
      %p184 = scmp.eq.s32.totalorder %s27, 1
      %p185 = por %p183, %p184
      %p186 = scmp.ne.s32.totalorder %s175, %s176
      %p187 = scmp.eq.s32.totalorder %s27, 0
      %p188 = por %p186, %p187
      %p189 = scmp.ne.s32.totalorder %s175, %s176
      %p190 = scmp.eq.s32.totalorder %s28, 1
      %p191 = por %p189, %p190
      %p193 = scmp.ne.s32.totalorder %s176, %s192
      %p194 = scmp.eq.s32.totalorder %s28, 0
      %p195 = por %p193, %p194
      %p196 = scmp.le.s32.totalorder 1, %s22
      %p197 = scmp.lt.s32.totalorder %s22, 3
      %p198 = pnand %p196, %p197
      %p199 = pneg %p198
      // Predicated region
      $region9: #{tpu_custom_call.1} parent=5 // pred_check
        _
      $region10: #{tpu_custom_call.1} parent=5 // pred_check_branch
        %201 = sbr.rel (%p198) target = $region12
      $region11: #{tpu_custom_call.1} parent=5 // pred_region
        %s202 = ssub.s32 %s22, 1
        // Predicated region
        $region13: #{tpu_custom_call.1} parent=11 // pred_check
          %p203 = pneg %p83
        $region14: #{tpu_custom_call.1} parent=11 // pred_check_branch
          %205 = sbr.rel (%p203) target = $region16
        $region15: #{tpu_custom_call.1} parent=11 // pred_region
          %s207 = ssub.s32 512, 512
          %208 = vsyncadd [#allocation6], %s207
          %s209 = sshll.u32 [#allocation5], 4
          %s210 = int_to_ptr.vmem [resolvable:$true] %s209
          %215 = dma.hbm_to_vmem [thread:$0]  %s1, 512, %s210, [#allocation6], 128, 128, 8
        $region16: #{tpu_custom_call.1} parent=11 // pred_fallthru
          _
        // Predicated region
        $region17: #{tpu_custom_call.1} parent=11 // pred_check
          %p216 = pneg %p104
        $region18: #{tpu_custom_call.1} parent=11 // pred_check_branch
          %218 = sbr.rel (%p216) target = $region20
        $region19: #{tpu_custom_call.1} parent=11 // pred_region
          _
        $region20: #{tpu_custom_call.1} parent=11 // pred_fallthru
          _
      $region12: #{tpu_custom_call.1} parent=5 // pred_fallthru
        _
      %p219 = scmp.lt.s32.totalorder %s22, 2
      // Predicated region
      $region21: #{tpu_custom_call.1} parent=5 // pred_check
        %p220 = pneg %p219
      $region22: #{tpu_custom_call.1} parent=5 // pred_check_branch
        %222 = sbr.rel (%p220) target = $region24
      $region23: #{tpu_custom_call.1} parent=5 // pred_region
        // Predicated region
        $region25: #{tpu_custom_call.1} parent=23 // pred_check
          %p223 = pneg %p56
        $region26: #{tpu_custom_call.1} parent=23 // pred_check_branch
          %225 = sbr.rel (%p223) target = $region28
        $region27: #{tpu_custom_call.1} parent=23 // pred_region
          %s226 = sand.u32 %s46, 1
          %s227 = scalar_lea.sflag [#allocation3], %s226
          %s228 = sand.u32 %s46, 1
          %s229 = smul.addr %s228, 8
          %s230 = scalar_lea.vmem [#allocation2], %s229
          %s232 = ssub.s32 128, 128
          %233 = vsyncadd %s227, %s232
          %s234 = sadd.s32 %s30, %s29
          %s235 = smul.addr %s234, 128
          %s236 = scalar_lea.hbm %s0, %s235
          %s238 = sshll.u32 %s230, 4
          %s239 = int_to_ptr.vmem [resolvable:$true] %s238
          %241 = dma.hbm_to_vmem [thread:$0]  %s236, 128, %s239, %s227
        $region28: #{tpu_custom_call.1} parent=23 // pred_fallthru
          _
      $region24: #{tpu_custom_call.1} parent=5 // pred_fallthru
        _
      %p242 = scmp.le.s32.totalorder 1, %s22
      %p243 = scmp.lt.s32.totalorder %s22, 3
      %p244 = pnand %p242, %p243
      %p245 = pneg %p244
      // Predicated region
      $region29: #{tpu_custom_call.1} parent=5 // pred_check
        _
      $region30: #{tpu_custom_call.1} parent=5 // pred_check_branch
        %247 = sbr.rel (%p244) target = $region32
      $region31: #{tpu_custom_call.1} parent=5 // pred_region
        %s248 = ssub.s32 %s22, 1
        %s249 = sand.u32 %s49, 1
        %s250 = scalar_lea.sflag [#allocation3], %s249
        %s251 = sand.u32 %s49, 1
        %s252 = smul.addr %s251, 8
        %s253 = scalar_lea.vmem [#allocation2], %s252
        // Predicated region
        $region33: #{tpu_custom_call.1} parent=31 // pred_check
          %p254 = pneg %p62
        $region34: #{tpu_custom_call.1} parent=31 // pred_check_branch
          %256 = sbr.rel (%p254) target = $region36
        $region35: #{tpu_custom_call.1} parent=31 // pred_region
          %257 = dma.done %s250, 128
        $region36: #{tpu_custom_call.1} parent=31 // pred_fallthru
          _
        // Predicated region
        $region37: #{tpu_custom_call.1} parent=31 // pred_check
          %p258 = pneg %p83
        $region38: #{tpu_custom_call.1} parent=31 // pred_check_branch
          %260 = sbr.rel (%p258) target = $region40
        $region39: #{tpu_custom_call.1} parent=31 // pred_region
          %261 = dma.done [#allocation6], 512
        $region40: #{tpu_custom_call.1} parent=31 // pred_fallthru
          _
        %s262 = sand.u32 %s49, 1
        %s263 = scalar_lea.sflag [#allocation3], %s262
        %s264 = sand.u32 %s49, 1
        %s265 = smul.addr %s264, 8
        %s266 = scalar_lea.vmem [#allocation2], %s265
        %p267 = pneg %p62
        %p268 = pneg %p59
        %p269 = pneg %p83
        %p270 = pneg %p80
        %p271 = pneg %p104
        %p272 = pneg %p101
        %p273 = pneg %p132
        %p274 = pneg %p129
        %s275 = sand.u32 %s119, 1
        %s276 = scalar_lea.sflag [#allocation4], %s275
        %s277 = sand.u32 %s119, 1
        %s278 = smul.addr %s277, 8
        %s279 = scalar_lea.vmem [#allocation7], %s278
        %p280 = pneg %p160
        %p281 = pneg %p157
        %s282 = sand.u32 %s27, 1
        %s283 = scalar_lea.sflag [#allocation9], %s282
        %s284 = sand.u32 %s147, 1
        %s285 = smul.addr %s284, 8
        %s286 = scalar_lea.vmem [#allocation8], %s285
        %p287 = pneg %p188
        %p288 = pneg %p185
        %s289 = sand.u32 %s27, 1
        %s290 = scalar_lea.sflag [#allocation9], %s289
        %s291 = sand.u32 %s175, 1
        %s292 = smul.addr %s291, 8
        %s293 = scalar_lea.vmem [#allocation10], %s292
        %v294 = vld [vmem:[%s253] sm:$0xff]
        %v295 = vld [vmem:[#allocation5] sm:$0xff]
        %v296 = vld [vmem:[#allocation5 + $0x8] sm:$0xff]
        %v297 = vld [vmem:[#allocation5 + $0x10] sm:$0xff]
        %v298 = vld [vmem:[#allocation5 + $0x18] sm:$0xff]
        %v299 = vld [vmem:[%s2] sm:$0x1]
        %v301 = vlaneseq
        %v302 = vshrl.u32 %v301, 7
        %v303 = vsub.s32 0, %v302
        %v304 = vrot.slane %v299, %v303
        %vm306 = vcmask 261120
        %v308 = vsel %vm306, %v294, 0
        %310 = vmatprep.subr.mxu0 0.0
        %311 = vmatpush1.msra.mxu0 %v295
        %312 = vmatprep.subr.mxu0 0.0
        %313 = vmatpush1.msra.mxu0 %v296
        %314 = vmatprep.subr.mxu0 0.0
        %315 = vmatpush1.msra.mxu0 %v297
        %316 = vmatprep.subr.mxu0 0.0
        %317 = vmatpush1.msra.mxu0 %v298
        %318 = vmatprep.subr.mxu0 0.0
        %319 = vmatpush1.msra.mxu0 0.0
        %320 = vmatprep.subr.mxu0 0.0
        %321 = vmatpush1.msra.mxu0 0.0
        %322 = vmatprep.subr.mxu0 0.0
        %323 = vmatpush1.msra.mxu0 0.0
        %324 = vmatprep.subr.mxu0 0.0
        %325 = vmatpush1.msra.mxu0 0.0
        %326 = vmatprep.subr.mxu0 0.0
        %327 = vmatpush1.msra.mxu0 0.0
        %328 = vmatprep.subr.mxu0 0.0
        %329 = vmatpush1.msra.mxu0 0.0
        %330 = vmatprep.subr.mxu0 0.0
        %331 = vmatpush1.msra.mxu0 0.0
        %332 = vmatprep.subr.mxu0 0.0
        %333 = vmatpush1.msra.mxu0 0.0
        %334 = vmatprep.subr.mxu0 0.0
        %335 = vmatpush1.msra.mxu0 0.0
        %336 = vmatprep.subr.mxu0 0.0
        %337 = vmatpush1.msra.mxu0 0.0
        %338 = vmatprep.subr.mxu0 0.0
        %339 = vmatpush1.msra.mxu0 0.0
        %340 = vmatprep.subr.mxu0 0.0
        %341 = vmatpush1.msra.mxu0 0.0
        %342 = vmatprep.subr.mxu0 0.0
        %343 = vmatpush1.msra.mxu0 0.0
        %344 = vmatprep.subr.mxu0 0.0
        %345 = vmatpush1.msra.mxu0 0.0
        %346 = vmatprep.subr.mxu0 0.0
        %347 = vmatpush1.msra.mxu0 0.0
        %348 = vmatprep.subr.mxu0 0.0
        %349 = vmatpush1.msra.mxu0 0.0
        %350 = vmatprep.subr.mxu0 0.0
        %351 = vmatpush1.msra.mxu0 0.0
        %352 = vmatprep.subr.mxu0 0.0
        %353 = vmatpush1.msra.mxu0 0.0
        %354 = vmatprep.subr.mxu0 0.0
        %355 = vmatpush1.msra.mxu0 0.0
        %356 = vmatprep.subr.mxu0 0.0
        %357 = vmatpush1.msra.mxu0 0.0
        %358 = vmatprep.subr.mxu0 0.0
        %359 = vmatpush1.msra.mxu0 0.0
        %360 = vmatprep.subr.mxu0 0.0
        %361 = vmatpush1.msra.mxu0 0.0
        %362 = vmatprep.subr.mxu0 0.0
        %363 = vmatpush1.msra.mxu0 0.0
        %364 = vmatprep.subr.mxu0 0.0
        %365 = vmatpush1.msra.mxu0 0.0
        %366 = vmatprep.subr.mxu0 0.0
        %367 = vmatpush1.msra.mxu0 0.0
        %368 = vmatprep.subr.mxu0 0.0
        %369 = vmatpush1.msra.mxu0 0.0
        %370 = vmatprep.subr.mxu0 0.0
        %371 = vmatpush1.msra.mxu0 0.0
        %372 = vmatprep.subr.mxu0 0.0
        %373 = vmatpush1.msra.mxu0 0.0
        %374 = vmatprep.mubr.f32.mxu0 0.0
        %375 = vmatmul.mubr.f32.gmra.mrb[0].mxu0 %v308
        %v376 = vpop.f32.mrb[0].mxu0
        %v377 = vadd.f32 %v304, %v376
        %v378 = vpop.f32.mrb[0].mxu0
        %379 = vdwg.mxu0
        %v380 = vmul.f32 %v377, 0.35355338
        %381 = vst.msk [vmem:[%s279] sm:$0xff] %vm306, %v380
        %383 = vrot.lane.b32.xlu0 %v377, 96
        %v384 = vpop.permute.xlu0 %383
        %386 = vst.msk [vmem:[%s286] sm:$0xff] %vm306, %v384
        %387 = vrot.lane.b32.xlu0 %v377, 64
        %v388 = vpop.permute.xlu0 %387
        %390 = vst.msk [vmem:[%s293] sm:$0xff] %vm306, %v388
        %s391 = sand.u32 %s119, 1
        %s392 = scalar_lea.sflag [#allocation4], %s391
        %s393 = sand.u32 %s119, 1
        %s394 = smul.addr %s393, 8
        %s395 = scalar_lea.vmem [#allocation7], %s394
        %s396 = sand.u32 %s27, 1
        %s397 = scalar_lea.sflag [#allocation9], %s396
        %s398 = sand.u32 %s147, 1
        %s399 = smul.addr %s398, 8
        %s400 = scalar_lea.vmem [#allocation8], %s399
        %s401 = sand.u32 %s27, 1
        %s402 = scalar_lea.sflag [#allocation9], %s401
        %s403 = sand.u32 %s175, 1
        %s404 = smul.addr %s403, 8
        %s405 = scalar_lea.vmem [#allocation10], %s404
        // Predicated region
        $region41: #{tpu_custom_call.1} parent=31 // pred_check
          %p406 = pneg %p129
        $region42: #{tpu_custom_call.1} parent=31 // pred_check_branch
          %408 = sbr.rel (%p406) target = $region44
        $region43: #{tpu_custom_call.1} parent=31 // pred_region
          %s410 = ssub.s32 128, 128
          %411 = vsyncadd %s392, %s410
          %s412 = sadd.s32 %s32, %s31
          %s413 = smul.addr %s412, 128
          %s414 = scalar_lea.hbm %s3, %s413
          %s416 = sshll.u32 %s395, 4
          %s417 = int_to_ptr.vmem [resolvable:$true] %s416
          %419 = dma.vmem_to_hbm [thread:$0]  %s417, 128, %s414, %s392
        $region44: #{tpu_custom_call.1} parent=31 // pred_fallthru
          _
        // Predicated region
        $region45: #{tpu_custom_call.1} parent=31 // pred_check
          %p420 = pneg %p157
        $region46: #{tpu_custom_call.1} parent=31 // pred_check_branch
          %422 = sbr.rel (%p420) target = $region48
        $region47: #{tpu_custom_call.1} parent=31 // pred_region
          %s424 = ssub.s32 128, 128
          %425 = vsyncadd %s397, %s424
          %s426 = sadd.s32 %s32, %s31
          %s427 = smul.addr %s426, 128
          %s428 = scalar_lea.hbm %s4, %s427
          %s430 = sshll.u32 %s400, 4
          %s431 = int_to_ptr.vmem [resolvable:$true] %s430
          %433 = dma.vmem_to_hbm [thread:$0]  %s431, 128, %s428, %s397
        $region48: #{tpu_custom_call.1} parent=31 // pred_fallthru
          _
        // Predicated region
        $region49: #{tpu_custom_call.1} parent=31 // pred_check
          %p434 = pneg %p185
        $region50: #{tpu_custom_call.1} parent=31 // pred_check_branch
          %436 = sbr.rel (%p434) target = $region52
        $region51: #{tpu_custom_call.1} parent=31 // pred_region
          %s438 = ssub.s32 128, 128
          %439 = vsyncadd %s402, %s438
          %s440 = sadd.s32 %s32, %s31
          %s441 = smul.addr %s440, 128
          %s442 = scalar_lea.hbm %s5, %s441
          %s444 = sshll.u32 %s405, 4
          %s445 = int_to_ptr.vmem [resolvable:$true] %s444
          %447 = dma.vmem_to_hbm [thread:$0]  %s445, 128, %s442, %s402
        $region52: #{tpu_custom_call.1} parent=31 // pred_fallthru
          _
      $region32: #{tpu_custom_call.1} parent=5 // pred_fallthru
        _
      %p448 = scmp.le.s32.totalorder 2, %s22
      // Predicated region
      $region53: #{tpu_custom_call.1} parent=5 // pred_check
        %p449 = pneg %p448
      $region54: #{tpu_custom_call.1} parent=5 // pred_check_branch
        %451 = sbr.rel (%p449) target = $region56
      $region55: #{tpu_custom_call.1} parent=5 // pred_region
        %s452 = ssub.s32 %s22, 2
        // Predicated region
        $region57: #{tpu_custom_call.1} parent=55 // pred_check
          %p453 = pneg %p135
        $region58: #{tpu_custom_call.1} parent=55 // pred_check_branch
          %455 = sbr.rel (%p453) target = $region60
        $region59: #{tpu_custom_call.1} parent=55 // pred_region
          %s456 = sand.u32 %s120, 1
          %s457 = scalar_lea.sflag [#allocation4], %s456
          %s458 = sand.u32 %s120, 1
          %s459 = smul.addr %s458, 8
          %s460 = scalar_lea.vmem [#allocation7], %s459
          %461 = dma.done %s457, 128
        $region60: #{tpu_custom_call.1} parent=55 // pred_fallthru
          _
        // Predicated region
        $region61: #{tpu_custom_call.1} parent=55 // pred_check
          %p462 = pneg %p163
        $region62: #{tpu_custom_call.1} parent=55 // pred_check_branch
          %464 = sbr.rel (%p462) target = $region64
        $region63: #{tpu_custom_call.1} parent=55 // pred_region
          %s465 = sand.u32 %s28, 1
          %s466 = scalar_lea.sflag [#allocation9], %s465
          %s467 = sand.u32 %s148, 1
          %s468 = smul.addr %s467, 8
          %s469 = scalar_lea.vmem [#allocation8], %s468
          %470 = dma.done %s466, 128
        $region64: #{tpu_custom_call.1} parent=55 // pred_fallthru
          _
        // Predicated region
        $region65: #{tpu_custom_call.1} parent=55 // pred_check
          %p471 = pneg %p191
        $region66: #{tpu_custom_call.1} parent=55 // pred_check_branch
          %473 = sbr.rel (%p471) target = $region68
        $region67: #{tpu_custom_call.1} parent=55 // pred_region
          %s474 = sand.u32 %s28, 1
          %s475 = scalar_lea.sflag [#allocation9], %s474
          %s476 = sand.u32 %s176, 1
          %s477 = smul.addr %s476, 8
          %s478 = scalar_lea.vmem [#allocation10], %s477
          %479 = dma.done %s475, 128
        $region68: #{tpu_custom_call.1} parent=55 // pred_fallthru
          _
      $region56: #{tpu_custom_call.1} parent=5 // pred_fallthru
        _
    $region6: #{tpu_custom_call.1} parent=1 // loop_footer
      %s26 = sadd.s32 1, %s22
    $region7: #{tpu_custom_call.1} parent=1 // loop_footer_branch
      %21 = sbr.rel target = $region3
    $region8: #{tpu_custom_call.1} parent=1 // loop_exit
      _
    %480 = vsyncpa [#allocation3], 1
    %s481 = scalar_lea.sflag [#allocation3], 1
    %482 = vsyncpa %s481, 1
    %483 = vsyncpa [#allocation6], 1
    %484 = vsyncpa [#allocation4], 1
    %s485 = scalar_lea.sflag [#allocation4], 1
    %486 = vsyncpa %s485, 1
    %487 = vsyncpa [#allocation9], 1
    %s488 = scalar_lea.sflag [#allocation9], 1
    %489 = vsyncpa %s488, 1

</llo_original>
